<compile_context>
chip_gen: v7x
topology: tpu7x:2x2x1
jax: 0.10.0
libtpu: 0.0.40
codegen_flags: <defaults>
</compile_context>

<pallas_src>
import functools

import jax
import jax.numpy as jnp
import numpy as np
from jax import lax
from jax.experimental import pallas as pl
from jax.experimental.pallas import tpu as pltpu


# ------------------------------ Pallas kernel ------------------------------ #

def _landmark_kernel(x_ref, w_ref, b_ref, o_ref):
    # x: (Cin, TW)   w: (Cout, Cin)   b: (Cout, 1)   ->   o: (Cout, TW)
    y = jnp.dot(w_ref[...], x_ref[...], preferred_element_type=jnp.float32)
    o_ref[...] = (y + b_ref[...]).astype(o_ref.dtype)


def _pick_spatial_tile(hw, max_tile=1024):
    """Largest tile <= max_tile that divides hw and is a multiple of 128; else whole hw."""
    if hw <= max_tile:
        return hw
    for t in range(max_tile, 127, -128):
        if hw % t == 0:
            return t
    return hw


# -------------------------------- wrapper ----------------------------------- #

def landmark_head_forward(x_nchw, w_oihw, b, *, num_anchors):
    N, Cin, H, W = x_nchw.shape
    Cout = w_oihw.shape[0]
    assert Cout == num_anchors * 8
    HW = H * W

    x3 = x_nchw.reshape(N, Cin, HW)      # (N, Cin, H*W)   -- no transpose needed
    w2 = w_oihw[:, :, 0, 0]              # (Cout, Cin)
    b2 = b.reshape(Cout, 1)              # broadcast along lanes inside the kernel

    TW = _pick_spatial_tile(HW)

    out3 = pl.pallas_call(
        _landmark_kernel,
        out_shape=jax.ShapeDtypeStruct((N, Cout, HW), jnp.float32),
        grid_spec=pltpu.PrefetchScalarGridSpec(
            num_scalar_prefetch=0,
            grid=(N, HW // TW),
            in_specs=[
                pl.BlockSpec((None, Cin, TW), lambda n, t: (n, 0, t)),  # activations
                pl.BlockSpec((Cout, Cin), lambda n, t: (0, 0)),         # weight (resident)
                pl.BlockSpec((Cout, 1), lambda n, t: (0, 0)),           # bias (resident)
            ],
            out_specs=pl.BlockSpec((None, Cout, TW), lambda n, t: (n, 0, t)),
        ),
        compiler_params=pltpu.CompilerParams(
            dimension_semantics=("parallel", "parallel")),
    )(x3, w2, b2)

    # permute(0, 2, 3, 1).view(N, -1, 8) of the PyTorch module:
    out = jnp.transpose(out3, (0, 2, 1))          # (N, H*W, Cout)
    return out.reshape(N, HW * num_anchors, 8)    # (N, H*W*num_anchors, 8)


# --------------------------- params & reference ----------------------------- #

def init_params(key, inchannels, num_anchors):
    cout = num_anchors * 8
    kw, kb = jax.random.split(key)
    bound = 1.0 / np.sqrt(inchannels)   # PyTorch Conv2d default init bound (fan_in = Cin*1*1)
    W = jax.random.uniform(kw, (cout, inchannels, 1, 1), jnp.float32, -bound, bound)
    b = jax.random.uniform(kb, (cout,), jnp.float32, -bound, bound)
    return W, b


def reference_forward(x, w_oihw, b, *, num_anchors):
    y = lax.conv_general_dilated(
        x, w_oihw, (1, 1), [(0, 0), (0, 0)],
        dimension_numbers=("NCHW", "OIHW", "NCHW"))
    y = y + b.reshape(1, -1, 1, 1)
    y = jnp.transpose(y, (0, 2, 3, 1))                       # NHWC
    return y.reshape(y.shape[0], -1, 8)


# ----------------------------------- main ------------------------------------ #

if __name__ == "__main__":
    key = jax.random.PRNGKey(0)
    k_x, k_p = jax.random.split(key)

    # Small shapes consistent with the module (default inchannels=512 scaled down).
    N, inchannels, H, W = 2, 64, 16, 16
    num_anchors = 3

    x = jax.random.normal(k_x, (N, inchannels, H, W), dtype=jnp.float32)
    Wc, b = init_params(k_p, inchannels, num_anchors)

    fwd = jax.jit(functools.partial(landmark_head_forward, num_anchors=num_anchors))
    out = jax.block_until_ready(fwd(x, Wc, b))

    ref = jax.block_until_ready(reference_forward(x, Wc, b, num_anchors=num_anchors))

    assert out.shape == (N, H * W * num_anchors, 8), out.shape
    np.testing.assert_allclose(np.asarray(out), np.asarray(ref), rtol=1e-3, atol=1e-3)

    print("KERNEL_OK")
</pallas_src>

<mosaic_0001>
module attributes {stable_mosaic.version = 11 : i64} {
  func.func @_landmark_kernel(%arg0: i32, %arg1: i32, %arg2: memref<1x64x256xf32, #tpu.memory_space<vmem>>, %arg3: memref<24x64xf32, #tpu.memory_space<vmem>>, %arg4: memref<24x1xf32, #tpu.memory_space<vmem>>, %arg5: memref<1x24x256xf32, #tpu.memory_space<vmem>>) attributes {dimension_semantics = [#tpu.dimension_semantics<parallel>, #tpu.dimension_semantics<parallel>], iteration_bounds = array<i64: 2, 1>, scalar_prefetch = 0 : i64, scratch_operands = 0 : i64, tpu.core_type = #tpu.core_type<tc>, window_params = [{transform_indices = @transform_0, window_bounds = array<i64: 1, 64, 256>}, {pipeline_mode = #tpu.pipeline_mode<synchronous>, transform_indices = @transform_1, window_bounds = array<i64: 24, 64>}, {pipeline_mode = #tpu.pipeline_mode<synchronous>, transform_indices = @transform_2, window_bounds = array<i64: 24, 1>}, {transform_indices = @transform_3, window_bounds = array<i64: 1, 24, 256>}]} {
    %c0 = arith.constant 0 : index
    %c0_0 = arith.constant 0 : index
    %0 = vector.load %arg3[%c0, %c0_0] : memref<24x64xf32, #tpu.memory_space<vmem>>, vector<24x64xf32>
    %c0_1 = arith.constant 0 : index
    %c0_2 = arith.constant 0 : index
    %c0_3 = arith.constant 0 : index
    %1 = vector.load %arg2[%c0_1, %c0_2, %c0_3] : memref<1x64x256xf32, #tpu.memory_space<vmem>>, vector<1x64x256xf32>
    %2 = vector.shape_cast %1 : vector<1x64x256xf32> to vector<64x256xf32>
    %cst = arith.constant dense<0.000000e+00> : vector<24x256xf32>
    %3 = tpu.matmul %0, %2, %cst {dimension_numbers = #tpu.dot_dimension_numbers<[1], [0], [0], [1], [0, 0, 1, 1], [], []>} : vector<24x64xf32>, vector<64x256xf32>, vector<24x256xf32> -> vector<24x256xf32>
    %c0_4 = arith.constant 0 : index
    %c0_5 = arith.constant 0 : index
    %4 = vector.load %arg4[%c0_4, %c0_5] : memref<24x1xf32, #tpu.memory_space<vmem>>, vector<24x1xf32>
    %5 = vector.broadcast %4 : vector<24x1xf32> to vector<24x256xf32>
    %6 = arith.addf %3, %5 : vector<24x256xf32>
    %c0_6 = arith.constant 0 : index
    %c0_7 = arith.constant 0 : index
    %c0_8 = arith.constant 0 : index
    %7 = vector.load %arg5[%c0_6, %c0_7, %c0_8] : memref<1x24x256xf32, #tpu.memory_space<vmem>>, vector<1x24x256xf32>
    %8 = vector.shape_cast %7 : vector<1x24x256xf32> to vector<24x256xf32>
    %9 = vector.shape_cast %6 : vector<24x256xf32> to vector<1x24x256xf32>
    tpu.vector_store %arg5[%c0_6, %c0_7, %c0_8], %9 {strides = array<i32>} : memref<1x24x256xf32, #tpu.memory_space<vmem>>, vector<1x24x256xf32>,
    return
  }
  func.func @transform_0(%arg0: i32, %arg1: i32) -> (i32, i32, i32) {
    %c0_i32 = arith.constant 0 : i32
    %c0_i32_0 = arith.constant 0 : i32
    return %arg0, %c0_i32, %arg1 : i32, i32, i32
  }
  func.func @transform_1(%arg0: i32, %arg1: i32) -> (i32, i32) {
    %c0_i32 = arith.constant 0 : i32
    %c0_i32_0 = arith.constant 0 : i32
    %c0_i32_1 = arith.constant 0 : i32
    return %c0_i32, %c0_i32_0 : i32, i32
  }
  func.func @transform_2(%arg0: i32, %arg1: i32) -> (i32, i32) {
    %c0_i32 = arith.constant 0 : i32
    %c0_i32_0 = arith.constant 0 : i32
    %c0_i32_1 = arith.constant 0 : i32
    return %c0_i32, %c0_i32_0 : i32, i32
  }
  func.func @transform_3(%arg0: i32, %arg1: i32) -> (i32, i32, i32) {
    %c0_i32 = arith.constant 0 : i32
    %c0_i32_0 = arith.constant 0 : i32
    return %arg0, %c0_i32, %arg1 : i32, i32, i32
  }
}

</mosaic_0001>

<llo_original>
// kernel: landmark_head_forward.1
$region0: #{landmark_head_forward.1}
  #allocation0 [shape = 'u32[]', space=smem, size = 0x4, offset = 0x4, fixed_abs, tag = 'smem constant byte address 0x4 - core index']
  #allocation1 [shape = 'u32[144,128]{1,0:T(1,128)}', space=vmem, size = 0x12000, scoped, tag = 'internal scratch']
  %s0 = inlined_call_operand.vmem [shape: f32[2,64,256], index: 0, kind: input, shape index: {}]
  %s1 = inlined_call_operand.vmem [shape: f32[24,64], index: 1, kind: input, shape index: {}]
  %s2 = inlined_call_operand.vmem [shape: f32[24,1], index: 2, kind: input, shape index: {}]
  %s3 = inlined_call_operand.vmem [shape: f32[2,24,256], index: 3, kind: output, shape index: {}]
  %s4 = sld [smem:[#allocation0]]
  $region45: #{landmark_head_forward.1} parent=0
    _
  %s6 = ssub.s32 1, %s4
  %s7 = scalar_select 0, %s6, %s4
  loop: start=0, step=1, limit=4
  $region2: #{landmark_head_forward.1} parent=0 // loop_pre_header
    _
  $region3: #{landmark_head_forward.1} parent=0 // loop_header
    %s9 = sphi 0, %s13
    %p10 = scmp.ge.s32.totalorder %s9, 4
    %s16 = sphi 0, %s28
    %s17 = sphi 0, %s24
    %s18 = sphi 0, %s16
    %s19 = sphi 0, %s17
    %s20 = sphi 0, %s18
    %s21 = sphi 0, %s19
    %s33 = sphi 0, %s35
    %s36 = sphi 0, %s33
    %s37 = sphi 0, %s36
    %s53 = sphi 0, %s37
    %s57 = sphi 0, %s57
    %s59 = sphi 0, %s57
    %s60 = sphi 0, %s59
    %s74 = sphi 0, %s60
    %s78 = sphi 0, %s78
    %s80 = sphi 0, %s78
    %s81 = sphi 0, %s80
    %s95 = sphi 0, %s81
    %s103 = sphi 0, %s105
    %s106 = sphi 0, %s103
    %s107 = sphi 0, %s106
    %s123 = sphi 0, %s107
  $region4: #{landmark_head_forward.1} parent=0 // loop_header_branch
    %12 = sbr.rel (%p10) target = $region8
  $region5: #{landmark_head_forward.1} parent=0 // loop_body
    %s14 = ssub.s32 %s9, 1
    %s15 = ssub.s32 %s9, 2
    %s22 = sadd.s32 1, %s17
    %p23 = scmp.ge.s32.totalorder %s22, 1
    %s24 = scalar_select %p23, 0, %s22
    %s25 = sadd.s32 1, %s16
    %s26 = scalar_select %p23, %s25, %s16
    %p27 = scmp.ge.s32.totalorder %s26, 2
    %s28 = scalar_select %p27, 0, %s26
    %s29 = ssub.s32 %s16, %s28
    %s30 = ssub.s32 %s17, %s24
    %s31 = sor.u32 %s29, %s30
    %p32 = scmp.eq.s32.totalorder %s31, 0
    %s34 = sadd.s32 %s33, 1
    %s35 = scalar_select %p32, %s33, %s34
    %p38 = pneg %p32
    %p39 = scmp.eq.s32.totalorder %s9, 1
    %p40 = por %p38, %p39
    %p41 = scmp.ne.s32.totalorder %s33, %s36
    %p42 = scmp.eq.s32.totalorder %s9, 0
    %p43 = por %p41, %p42
    %p44 = scmp.ne.s32.totalorder %s33, %s36
    %p45 = scmp.eq.s32.totalorder %s14, 1
    %p46 = por %p44, %p45
    %p47 = scmp.ne.s32.totalorder %s36, %s37
    %p48 = scmp.eq.s32.totalorder %s14, 0
    %p49 = por %p47, %p48
    %p50 = scmp.ne.s32.totalorder %s36, %s37
    %p51 = scmp.eq.s32.totalorder %s15, 1
    %p52 = por %p50, %p51
    %p54 = scmp.ne.s32.totalorder %s37, %s53
    %p55 = scmp.eq.s32.totalorder %s15, 0
    %p56 = por %p54, %p55
    %s58 = sadd.s32 %s57, 1
    %p61 = scmp.eq.s32.totalorder %s9, 1
    %p62 = scmp.ne.s32.totalorder %s57, %s59
    %p63 = scmp.eq.s32.totalorder %s9, 0
    %p64 = por %p62, %p63
    %p65 = scmp.ne.s32.totalorder %s57, %s59
    %p66 = scmp.eq.s32.totalorder %s14, 1
    %p67 = por %p65, %p66
    %p68 = scmp.ne.s32.totalorder %s59, %s60
    %p69 = scmp.eq.s32.totalorder %s14, 0
    %p70 = por %p68, %p69
    %p71 = scmp.ne.s32.totalorder %s59, %s60
    %p72 = scmp.eq.s32.totalorder %s15, 1
    %p73 = por %p71, %p72
    %p75 = scmp.ne.s32.totalorder %s60, %s74
    %p76 = scmp.eq.s32.totalorder %s15, 0
    %p77 = por %p75, %p76
    %s79 = sadd.s32 %s78, 1
    %p82 = scmp.eq.s32.totalorder %s9, 1
    %p83 = scmp.ne.s32.totalorder %s78, %s80
    %p84 = scmp.eq.s32.totalorder %s9, 0
    %p85 = por %p83, %p84
    %p86 = scmp.ne.s32.totalorder %s78, %s80
    %p87 = scmp.eq.s32.totalorder %s14, 1
    %p88 = por %p86, %p87
    %p89 = scmp.ne.s32.totalorder %s80, %s81
    %p90 = scmp.eq.s32.totalorder %s14, 0
    %p91 = por %p89, %p90
    %p92 = scmp.ne.s32.totalorder %s80, %s81
    %p93 = scmp.eq.s32.totalorder %s15, 1
    %p94 = por %p92, %p93
    %p96 = scmp.ne.s32.totalorder %s81, %s95
    %p97 = scmp.eq.s32.totalorder %s15, 0
    %p98 = por %p96, %p97
    %s99 = ssub.s32 %s16, %s28
    %s100 = ssub.s32 %s17, %s24
    %s101 = sor.u32 %s99, %s100
    %p102 = scmp.eq.s32.totalorder %s101, 0
    %s104 = sadd.s32 %s103, 1
    %s105 = scalar_select %p102, %s103, %s104
    %p108 = pneg %p102
    %p109 = scmp.eq.s32.totalorder %s9, 1
    %p110 = por %p108, %p109
    %p111 = scmp.ne.s32.totalorder %s103, %s106
    %p112 = scmp.eq.s32.totalorder %s9, 0
    %p113 = por %p111, %p112
    %p114 = scmp.ne.s32.totalorder %s103, %s106
    %p115 = scmp.eq.s32.totalorder %s14, 1
    %p116 = por %p114, %p115
    %p117 = scmp.ne.s32.totalorder %s106, %s107
    %p118 = scmp.eq.s32.totalorder %s14, 0
    %p119 = por %p117, %p118
    %p120 = scmp.ne.s32.totalorder %s106, %s107
    %p121 = scmp.eq.s32.totalorder %s15, 1
    %p122 = por %p120, %p121
    %p124 = scmp.ne.s32.totalorder %s107, %s123
    %p125 = scmp.eq.s32.totalorder %s15, 0
    %p126 = por %p124, %p125
    %p127 = scmp.le.s32.totalorder 1, %s9
    %p128 = scmp.lt.s32.totalorder %s9, 3
    %p129 = pnand %p127, %p128
    %p130 = pneg %p129
    // Predicated region
    $region9: #{landmark_head_forward.1} parent=5 // pred_check
      _
    $region10: #{landmark_head_forward.1} parent=5 // pred_check_branch
      %132 = sbr.rel (%p129) target = $region12
    $region11: #{landmark_head_forward.1} parent=5 // pred_region
      %s133 = ssub.s32 %s9, 1
      // Predicated region
      $region13: #{landmark_head_forward.1} parent=11 // pred_check
        %p134 = pneg %p70
      $region14: #{landmark_head_forward.1} parent=11 // pred_check_branch
        %136 = sbr.rel (%p134) target = $region16
      $region15: #{landmark_head_forward.1} parent=11 // pred_region
        _
      $region16: #{landmark_head_forward.1} parent=11 // pred_fallthru
        _
      // Predicated region
      $region17: #{landmark_head_forward.1} parent=11 // pred_check
        %p137 = pneg %p91
      $region18: #{landmark_head_forward.1} parent=11 // pred_check_branch
        %139 = sbr.rel (%p137) target = $region20
      $region19: #{landmark_head_forward.1} parent=11 // pred_region
        _
      $region20: #{landmark_head_forward.1} parent=11 // pred_fallthru
        _
    $region12: #{landmark_head_forward.1} parent=5 // pred_fallthru
      _
    %p140 = scmp.lt.s32.totalorder %s9, 2
    // Predicated region
    $region21: #{landmark_head_forward.1} parent=5 // pred_check
      %p141 = pneg %p140
    $region22: #{landmark_head_forward.1} parent=5 // pred_check_branch
      %143 = sbr.rel (%p141) target = $region24
    $region23: #{landmark_head_forward.1} parent=5 // pred_region
      // Predicated region
      $region25: #{landmark_head_forward.1} parent=23 // pred_check
        %p144 = pneg %p43
      $region26: #{landmark_head_forward.1} parent=23 // pred_check_branch
        %146 = sbr.rel (%p144) target = $region28
      $region27: #{landmark_head_forward.1} parent=23 // pred_region
        %s147 = smul.u32 2, %s17
        %p148 = scmp.lt.s32.totalorder %s16, 1
        %s149 = scalar_select %p148, %s16, 1
        %p150 = scmp.lt.s32.totalorder %s147, 1
        %s151 = scalar_select %p150, %s147, 1
        %s152 = smul.addr %s149, 16
        %s153 = sadd.s32 %s151, %s152
        %s154 = smul.addr %s153, 8
        %s155 = scalar_lea.vmem %s0, %s154
        %s156 = smul.u32 2, %s17
      $region28: #{landmark_head_forward.1} parent=23 // pred_fallthru
        _
    $region24: #{landmark_head_forward.1} parent=5 // pred_fallthru
      _
    %p157 = scmp.le.s32.totalorder 1, %s9
    %p158 = scmp.lt.s32.totalorder %s9, 3
    %p159 = pnand %p157, %p158
    %p160 = pneg %p159
    // Predicated region
    $region29: #{landmark_head_forward.1} parent=5 // pred_check
      _
    $region30: #{landmark_head_forward.1} parent=5 // pred_check_branch
      %162 = sbr.rel (%p159) target = $region32
    $region31: #{landmark_head_forward.1} parent=5 // pred_region
      %s163 = ssub.s32 %s9, 1
      %s164 = smul.u32 2, %s19
      %p165 = scmp.lt.s32.totalorder %s18, 1
      %s166 = scalar_select %p165, %s18, 1
      %p167 = scmp.lt.s32.totalorder %s164, 1
      %s168 = scalar_select %p167, %s164, 1
      %s169 = smul.addr %s166, 16
      %s170 = sadd.s32 %s168, %s169
      %s171 = smul.addr %s170, 8
      %s172 = scalar_lea.vmem %s0, %s171
      %p173 = pneg %p49
      %p174 = pneg %p46
      %p175 = pneg %p70
      %p176 = pneg %p67
      %p177 = pneg %p91
      %p178 = pneg %p88
      %p179 = pneg %p119
      %p180 = pneg %p116
      %s181 = smul.u32 2, %s19
      %p182 = scmp.lt.s32.totalorder %s18, 1
      %s183 = scalar_select %p182, %s18, 1
      %p184 = scmp.lt.s32.totalorder %s181, 1
      %s185 = scalar_select %p184, %s181, 1
      %s186 = smul.addr %s183, 6
      %s187 = sadd.s32 %s185, %s186
      %s188 = smul.addr %s187, 8
      %s189 = scalar_lea.vmem %s3, %s188
      %s190 = smul.u32 2, %s19
      %p191 = scmp.lt.s32.totalorder %s18, 1
      %s192 = scalar_select %p191, %s18, 1
      %p193 = scmp.lt.s32.totalorder %s190, 1
      %s194 = scalar_select %p193, %s190, 1
      %s195 = smul.addr %s192, 16
      %s196 = sadd.s32 %s194, %s195
      %s197 = smul.addr %s196, 8
      %s198 = scalar_lea.vmem %s0, %s197
      %s199 = smul.u32 2, %s19
      %s200 = smul.u32 2, %s19
      %p201 = scmp.lt.s32.totalorder %s18, 1
      %s202 = scalar_select %p201, %s18, 1
      %p203 = scmp.lt.s32.totalorder %s200, 1
      %s204 = scalar_select %p203, %s200, 1
      %s205 = smul.addr %s202, 6
      %s206 = sadd.s32 %s204, %s205
      %s207 = smul.addr %s206, 8
      %s208 = scalar_lea.vmem %s3, %s207
      %s209 = smul.u32 2, %s19
      %v210 = vld [vmem:[%s1] sm:$0xff]
      %v211 = vld [vmem:[%s1 + $0x8] sm:$0xff]
      %v212 = vld [vmem:[%s1 + $0x10] sm:$0xff]
      %v213 = vld [vmem:[%s198] sm:$0xff]
      %v214 = vld [vmem:[%s198 + $0x8] sm:$0xff]
      %v215 = vld [vmem:[%s198 + $0x10] sm:$0xff]
      %v216 = vld [vmem:[%s198 + $0x18] sm:$0xff]
      %v217 = vld [vmem:[%s198 + $0x20] sm:$0xff]
      %v218 = vld [vmem:[%s198 + $0x28] sm:$0xff]
      %v219 = vld [vmem:[%s198 + $0x30] sm:$0xff]
      %v220 = vld [vmem:[%s198 + $0x38] sm:$0xff]
      %v221 = vld [vmem:[%s198 + $0x40] sm:$0xff]
      %v222 = vld [vmem:[%s198 + $0x48] sm:$0xff]
      %v223 = vld [vmem:[%s198 + $0x50] sm:$0xff]
      %v224 = vld [vmem:[%s198 + $0x58] sm:$0xff]
      %v225 = vld [vmem:[%s198 + $0x60] sm:$0xff]
      %v226 = vld [vmem:[%s198 + $0x68] sm:$0xff]
      %v227 = vld [vmem:[%s198 + $0x70] sm:$0xff]
      %v228 = vld [vmem:[%s198 + $0x78] sm:$0xff]
      %v229 = vld [vmem:[%s2] sm:$0xff]
      %v230 = vld [vmem:[%s2 + $0x8] sm:$0xff]
      %v231 = vld [vmem:[%s2 + $0x10] sm:$0xff]
      %233 = vset.pattern.permute.xlu0 0
      %234 = vperm.xlu0 %233, %v229
      %v235 = vpop.permute.xlu0 %234
      %238 = vset.pattern.permute.xlu0 0
      %239 = vperm.xlu0 %238, %v230
      %v240 = vpop.permute.xlu0 %239
      %243 = vset.pattern.permute.xlu0 0
      %244 = vperm.xlu0 %243, %v231
      %v245 = vpop.permute.xlu0 %244
      %vm247 = vcmask 523264
      %v249 = vsel %vm247, %v210, 0
      %v252 = vsel %vm247, %v211, 0
      %v255 = vsel %vm247, %v212, 0
      %257 = vmatprep.subr.mxu0 %v214
      %258 = vmatpush1.msra.mxu0 %v213
      %259 = vmatprep.subr.mxu0 %v216
      %260 = vmatpush1.msra.mxu0 %v215
      %261 = vmatprep.subr.mxu0 %v218
      %262 = vmatpush1.msra.mxu0 %v217
      %263 = vmatprep.subr.mxu0 %v220
      %264 = vmatpush1.msra.mxu0 %v219
      %265 = vmatprep.subr.mxu0 %v222
      %266 = vmatpush1.msra.mxu0 %v221
      %267 = vmatprep.subr.mxu0 %v224
      %268 = vmatpush1.msra.mxu0 %v223
      %269 = vmatprep.subr.mxu0 %v226
      %270 = vmatpush1.msra.mxu0 %v225
      %271 = vmatprep.subr.mxu0 %v228
      %272 = vmatpush1.msra.mxu0 %v227
      %273 = vmatprep.subr.mxu0 0.0
      %274 = vmatpush1.msra.mxu0 0.0
      %275 = vmatprep.subr.mxu0 0.0
      %276 = vmatpush1.msra.mxu0 0.0
      %277 = vmatprep.subr.mxu0 0.0
      %278 = vmatpush1.msra.mxu0 0.0
      %279 = vmatprep.subr.mxu0 0.0
      %280 = vmatpush1.msra.mxu0 0.0
      %281 = vmatprep.subr.mxu0 0.0
      %282 = vmatpush1.msra.mxu0 0.0
      %283 = vmatprep.subr.mxu0 0.0
      %284 = vmatpush1.msra.mxu0 0.0
      %285 = vmatprep.subr.mxu0 0.0
      %286 = vmatpush1.msra.mxu0 0.0
      %287 = vmatprep.subr.mxu0 0.0
      %288 = vmatpush1.msra.mxu0 0.0
      %289 = vmatprep.subr.mxu0 0.0
      %290 = vmatpush1.msra.mxu0 0.0
      %291 = vmatprep.subr.mxu0 0.0
      %292 = vmatpush1.msra.mxu0 0.0
      %293 = vmatprep.subr.mxu0 0.0
      %294 = vmatpush1.msra.mxu0 0.0
      %295 = vmatprep.subr.mxu0 0.0
      %296 = vmatpush1.msra.mxu0 0.0
      %297 = vmatprep.subr.mxu0 0.0
      %298 = vmatpush1.msra.mxu0 0.0
      %299 = vmatprep.subr.mxu0 0.0
      %300 = vmatpush1.msra.mxu0 0.0
      %301 = vmatprep.subr.mxu0 0.0
      %302 = vmatpush1.msra.mxu0 0.0
      %303 = vmatprep.subr.mxu0 0.0
      %304 = vmatpush1.msra.mxu0 0.0
      %305 = vmatprep.subr.mxu0 0.0
      %306 = vmatpush1.msra.mxu0 0.0
      %307 = vmatprep.subr.mxu0 0.0
      %308 = vmatpush1.msra.mxu0 0.0
      %309 = vmatprep.subr.mxu0 0.0
      %310 = vmatpush1.msra.mxu0 0.0
      %311 = vmatprep.subr.mxu0 0.0
      %312 = vmatpush1.msra.mxu0 0.0
      %313 = vmatprep.subr.mxu0 0.0
      %314 = vmatpush1.msra.mxu0 0.0
      %315 = vmatprep.subr.mxu0 0.0
      %316 = vmatpush1.msra.mxu0 0.0
      %317 = vmatprep.subr.mxu0 0.0
      %318 = vmatpush1.msra.mxu0 0.0
      %319 = vmatprep.subr.mxu0 0.0
      %320 = vmatpush1.msra.mxu0 0.0
      %321 = vmatprep.mubr.f32.mxu0 0.0
      %322 = vmatmul.mubr.f32.gmra.mrb[0].mxu0 %v249
      %v323 = vpop.f32.mrb[0].mxu0
      %v324 = vadd.f32 %v235, %v323
      %v325 = vpop.f32.mrb[0].mxu0
      %v326 = vadd.f32 %v235, %v325
      %327 = vmatprep.mubr.f32.mxu0 0.0
      %328 = vmatmul.mubr.f32.gmra.mrb[0].mxu0 %v252
      %v329 = vpop.f32.mrb[0].mxu0
      %v330 = vadd.f32 %v240, %v329
      %v331 = vpop.f32.mrb[0].mxu0
      %v332 = vadd.f32 %v240, %v331
      %333 = vmatprep.mubr.f32.mxu0 0.0
      %334 = vmatmul.mubr.f32.gmra.mrb[0].mxu0 %v255
      %v335 = vpop.f32.mrb[0].mxu0
      %v336 = vadd.f32 %v245, %v335
      %v337 = vpop.f32.mrb[0].mxu0
      %v338 = vadd.f32 %v245, %v337
      %339 = vdwg.mxu0
      %340 = vst [vmem:[%s208] sm:$0xff] %v324
      %341 = vst [vmem:[%s208 + $0x8] sm:$0xff] %v326
      %342 = vst [vmem:[%s208 + $0x10] sm:$0xff] %v330
      %343 = vst [vmem:[%s208 + $0x18] sm:$0xff] %v332
      %344 = vst [vmem:[%s208 + $0x20] sm:$0xff] %v336
      %345 = vst [vmem:[%s208 + $0x28] sm:$0xff] %v338
      %s346 = smul.u32 2, %s19
      %p347 = scmp.lt.s32.totalorder %s18, 1
      %s348 = scalar_select %p347, %s18, 1
      %p349 = scmp.lt.s32.totalorder %s346, 1
      %s350 = scalar_select %p349, %s346, 1
      %s351 = smul.addr %s348, 6
      %s352 = sadd.s32 %s350, %s351
      %s353 = smul.addr %s352, 8
      %s354 = scalar_lea.vmem %s3, %s353
      // Predicated region
      $region33: #{landmark_head_forward.1} parent=31 // pred_check
        %p355 = pneg %p116
      $region34: #{landmark_head_forward.1} parent=31 // pred_check_branch
        %357 = sbr.rel (%p355) target = $region36
      $region35: #{landmark_head_forward.1} parent=31 // pred_region
        %s358 = smul.u32 2, %s19
      $region36: #{landmark_head_forward.1} parent=31 // pred_fallthru
        _
    $region32: #{landmark_head_forward.1} parent=5 // pred_fallthru
      _
    %p359 = scmp.le.s32.totalorder 2, %s9
    // Predicated region
    $region37: #{landmark_head_forward.1} parent=5 // pred_check
      %p360 = pneg %p359
    $region38: #{landmark_head_forward.1} parent=5 // pred_check_branch
      %362 = sbr.rel (%p360) target = $region40
    $region39: #{landmark_head_forward.1} parent=5 // pred_region
      %s363 = ssub.s32 %s9, 2
      // Predicated region
      $region41: #{landmark_head_forward.1} parent=39 // pred_check
        %p364 = pneg %p122
      $region42: #{landmark_head_forward.1} parent=39 // pred_check_branch
        %366 = sbr.rel (%p364) target = $region44
      $region43: #{landmark_head_forward.1} parent=39 // pred_region
        %s367 = smul.u32 2, %s21
        %p368 = scmp.lt.s32.totalorder %s20, 1
        %s369 = scalar_select %p368, %s20, 1
        %p370 = scmp.lt.s32.totalorder %s367, 1
        %s371 = scalar_select %p370, %s367, 1
        %s372 = smul.addr %s369, 6
        %s373 = sadd.s32 %s371, %s372
        %s374 = smul.addr %s373, 8
        %s375 = scalar_lea.vmem %s3, %s374
      $region44: #{landmark_head_forward.1} parent=39 // pred_fallthru
        _
    $region40: #{landmark_head_forward.1} parent=5 // pred_fallthru
      _
  $region6: #{landmark_head_forward.1} parent=0 // loop_footer
    %s13 = sadd.s32 1, %s9
  $region7: #{landmark_head_forward.1} parent=0 // loop_footer_branch
    %8 = sbr.rel target = $region3
  $region8: #{landmark_head_forward.1} parent=0 // loop_exit
    _

</llo_original>
